<compile_context>
chip_gen: v5e
topology: v5e:2x2
jax: 0.10.0
libtpu: 0.0.40
codegen_flags: <defaults>
</compile_context>

<pallas_src>
import math
import functools

import jax
import jax.numpy as jnp
from jax.experimental import pallas as pl
from jax.experimental.pallas import tpu as pltpu  # noqa: F401  (TPU backend import)


def _attn_kernel(x1_ref, x2_ref, w2_ref, b2_ref, o_ref, *, scale, batch):
    w2 = w2_ref[...]              # (D, D) in torch nn.Linear (out, in) layout
    b2 = b2_ref[...]              # (D, 1), broadcasts along the lane (S) axis

    def body(b, carry):
        x1d = x1_ref[b] * scale   # (D, S) lane-dense, scale folded here (1 vreg)
        x2d = x2_ref[b]           # (D, S)

        # v2^T = w2 @ x2^T + b2  -> (D, S); plain (m,k)@(k,n) contraction.
        v2t = jnp.dot(w2, x2d, preferred_element_type=jnp.float32) + b2

        # Scores already scaled: v4[q, k] = scale * sum_d x1[q,d] * x2[k,d] -> (S, S).
        # trans_a form on the tiny (7,128) operand only.
        v4 = jax.lax.dot_general(
            x1d, x2d, (((0,), (0,)), ((), ())),
            preferred_element_type=jnp.float32)

        # softmax over keys (last axis) == reference softmax(v3 * scale, dim=-1).
        m = jnp.max(v4, axis=-1, keepdims=True)
        e = jnp.exp(v4 - m)
        denom = jnp.sum(e, axis=-1, keepdims=True)
        v5 = e / denom            # exact divide (VALU/EUP slack; keeps f32 accuracy)

        # v6 = dropout(v5, 0.1)
        # TODO(synk): dropout kept as identity (eval/deterministic mode); training-mode
        # masking would need pltpu.prng_seed + pltpu.prng_random_bits and 1/(1-p) rescale.
        v6 = v5

        # v7^T[o, a] = sum_b v2[b, o] * v6[b, a]  == (v6^T @ v2)^T  -> (D, S).
        # Plain contraction; lane-dense unmasked store.
        v7t = jnp.dot(v2t, v6, preferred_element_type=jnp.float32)
        o_ref[b] = v7t.astype(o_ref.dtype)
        return carry

    jax.lax.fori_loop(0, batch, body, 0)


def model_forward(x1, x2, w1, b1, w2, b2, *, dim):
    """Pallas implementation of Model.forward.

    v1 = Linear(dim, 7)(x1) is never used in the returned value, so it is not computed.
    w2/b2 stay in torch nn.Linear (out, in) layout; the kernel computes everything in
    lane-dense (D, S) layout, so no weight transpose is needed anywhere.
    """
    del w1, b1  # dead branch of the original forward
    B, S, D = x1.shape
    assert x2.shape == (B, S, D)
    scale = 1.0 / math.sqrt(dim)

    # Layout plumbing (not compute): present S=128 on the lane axis.
    x1d = jnp.transpose(x1, (0, 2, 1))    # (B, D, S)
    x2d = jnp.transpose(x2, (0, 2, 1))    # (B, D, S)
    b2_col = b2.reshape(D, 1)

    kernel = functools.partial(_attn_kernel, scale=scale, batch=B)

    # Single invocation, no grid: default whole-array blocks land in VMEM.
    # Footprint (x1+x2+w2+scores+out) is far below VMEM limits on v5e/v6e/v7x.
    out_t = pl.pallas_call(
        kernel,
        out_shape=jax.ShapeDtypeStruct((B, D, S), jnp.float32),
    )(x1d, x2d, w2, b2_col)

    return jnp.transpose(out_t, (0, 2, 1))   # (B, S, D)


def reference_forward(x1, x2, w2, b2, *, dim):
    scale = 1.0 / math.sqrt(dim)
    hp = jax.lax.Precision.HIGHEST
    v2 = jnp.einsum("bsd,od->bso", x2, w2, precision=hp) + b2
    v3 = jnp.einsum("bsd,btd->bst", x1, x2, precision=hp)
    v5 = jax.nn.softmax(v3 * scale, axis=-1)
    return jnp.einsum("bst,bso->bto", v5, v2, precision=hp)


if __name__ == "__main__":
    # Module config (self-consistent instantiation): dim = num_heads * s = 7
    dim = 7
    num_heads = 1
    s = 7
    B, S, D = 2, 128, dim

    key = jax.random.PRNGKey(0)
    k_x1, k_x2, k_w1, k_b1, k_w2, k_b2 = jax.random.split(key, 6)

    x1 = jax.random.normal(k_x1, (B, S, D), dtype=jnp.float32)
    x2 = jax.random.normal(k_x2, (B, S, D), dtype=jnp.float32)

    # Deterministic Linear params (torch nn.Linear-style uniform init, fixed seed).
    bound1 = 1.0 / math.sqrt(dim)
    w1 = jax.random.uniform(k_w1, (num_heads * s, dim), minval=-bound1, maxval=bound1)
    b1 = jax.random.uniform(k_b1, (num_heads * s,), minval=-bound1, maxval=bound1)
    bound2 = 1.0 / math.sqrt(num_heads * s)
    w2 = jax.random.uniform(k_w2, (dim, num_heads * s), minval=-bound2, maxval=bound2)
    b2 = jax.random.uniform(k_b2, (dim,), minval=-bound2, maxval=bound2)

    out = model_forward(x1, x2, w1, b1, w2, b2, dim=dim)
    out = jax.block_until_ready(out)

    ref = reference_forward(x1, x2, w2, b2, dim=dim)
    assert out.shape == (B, S, D)
    # Exact softmax division + f32 MXU matmuls -> tight tolerance vs HIGHEST-precision reference.
    assert jnp.allclose(out, ref, atol=1e-4, rtol=1e-4), float(jnp.max(jnp.abs(out - ref)))

    print("KERNEL_OK")
</pallas_src>

<mosaic_0001>
module attributes {stable_mosaic.version = 11 : i64} {
  func.func @_attn_kernel(%arg0: memref<2x7x128xf32, #tpu.memory_space<vmem>>, %arg1: memref<2x7x128xf32, #tpu.memory_space<vmem>>, %arg2: memref<7x7xf32, #tpu.memory_space<vmem>>, %arg3: memref<7x1xf32, #tpu.memory_space<vmem>>, %arg4: memref<2x7x128xf32, #tpu.memory_space<vmem>>) attributes {dimension_semantics = [], scalar_prefetch = 0 : i64, scratch_operands = 0 : i64, tpu.core_type = #tpu.core_type<tc>} {
    %c0 = arith.constant 0 : index
    %c0_0 = arith.constant 0 : index
    %0 = vector.load %arg2[%c0, %c0_0] : memref<7x7xf32, #tpu.memory_space<vmem>>, vector<7x7xf32>
    %c0_1 = arith.constant 0 : index
    %c0_2 = arith.constant 0 : index
    %1 = vector.load %arg3[%c0_1, %c0_2] : memref<7x1xf32, #tpu.memory_space<vmem>>, vector<7x1xf32>
    %c0_i32 = arith.constant 0 : i32
    %c2_i32 = arith.constant 2 : i32
    %2 = arith.addi %c0_i32, %c2_i32 : i32
    %c1_i32 = arith.constant 1 : i32
    scf.for %arg5 = %c0_i32 to %2 step %c1_i32  : i32 {
      %3 = arith.index_cast %arg5 : i32 to index
      %c0_4 = arith.constant 0 : index
      %c0_5 = arith.constant 0 : index
      %4 = vector.load %arg0[%3, %c0_4, %c0_5] : memref<2x7x128xf32, #tpu.memory_space<vmem>>, vector<1x7x128xf32>
      %5 = vector.shape_cast %4 : vector<1x7x128xf32> to vector<7x128xf32>
      %cst = arith.constant 0.377964467 : f32
      %6 = vector.broadcast %cst : f32 to vector<7x128xf32>
      %7 = arith.mulf %5, %6 : vector<7x128xf32>
      %8 = arith.index_cast %arg5 : i32 to index
      %c0_6 = arith.constant 0 : index
      %c0_7 = arith.constant 0 : index
      %9 = vector.load %arg1[%8, %c0_6, %c0_7] : memref<2x7x128xf32, #tpu.memory_space<vmem>>, vector<1x7x128xf32>
      %10 = vector.shape_cast %9 : vector<1x7x128xf32> to vector<7x128xf32>
      %cst_8 = arith.constant dense<0.000000e+00> : vector<7x128xf32>
      %11 = tpu.matmul %0, %10, %cst_8 {dimension_numbers = #tpu.dot_dimension_numbers<[1], [0], [0], [1], [0, 0, 1, 1], [], []>} : vector<7x7xf32>, vector<7x128xf32>, vector<7x128xf32> -> vector<7x128xf32>
      %12 = vector.broadcast %1 : vector<7x1xf32> to vector<7x128xf32>
      %13 = arith.addf %11, %12 : vector<7x128xf32>
      %cst_9 = arith.constant dense<0.000000e+00> : vector<128x128xf32>
      %14 = tpu.matmul %7, %10, %cst_9 {dimension_numbers = #tpu.dot_dimension_numbers<[0], [0], [1], [1], [0, 1, 1, 1], [], []>} : vector<7x128xf32>, vector<7x128xf32>, vector<128x128xf32> -> vector<128x128xf32>
      %cst_10 = arith.constant dense<0xFF800000> : vector<128xf32>
      %15 = vector.multi_reduction <maximumf>, %14, %cst_10 [1] : vector<128x128xf32> to vector<128xf32>
      %16 = vector.shape_cast %15 : vector<128xf32> to vector<128x1xf32>
      %17 = vector.broadcast %16 : vector<128x1xf32> to vector<128x128xf32>
      %18 = arith.subf %14, %17 : vector<128x128xf32>
      %19 = math.exp %18 : vector<128x128xf32>
      %cst_11 = arith.constant dense<0.000000e+00> : vector<128xf32>
      %20 = vector.multi_reduction <add>, %19, %cst_11 [1] : vector<128x128xf32> to vector<128xf32>
      %21 = vector.shape_cast %20 : vector<128xf32> to vector<128x1xf32>
      %22 = vector.broadcast %21 : vector<128x1xf32> to vector<128x128xf32>
      %23 = arith.divf %19, %22 : vector<128x128xf32>
      %cst_12 = arith.constant dense<0.000000e+00> : vector<7x128xf32>
      %24 = tpu.matmul %13, %23, %cst_12 {dimension_numbers = #tpu.dot_dimension_numbers<[1], [0], [0], [1], [0, 0, 1, 1], [], []>} : vector<7x128xf32>, vector<128x128xf32>, vector<7x128xf32> -> vector<7x128xf32>
      %25 = arith.index_cast %arg5 : i32 to index
      %c0_13 = arith.constant 0 : index
      %c0_14 = arith.constant 0 : index
      %26 = vector.load %arg4[%25, %c0_13, %c0_14] : memref<2x7x128xf32, #tpu.memory_space<vmem>>, vector<1x7x128xf32>
      %27 = vector.shape_cast %26 : vector<1x7x128xf32> to vector<7x128xf32>
      %28 = vector.shape_cast %24 : vector<7x128xf32> to vector<1x7x128xf32>
      tpu.vector_store %arg4[%25, %c0_13, %c0_14], %28 {strides = array<i32>} : memref<2x7x128xf32, #tpu.memory_space<vmem>>, vector<1x7x128xf32>,
    }
    %c2_i32_3 = arith.constant 2 : i32
    return
  }
}

</mosaic_0001>

<llo_original>
// kernel: tpu_custom_call.1
$region0: #{tpu_custom_call.1}
  #allocation0 [shape = 'u32[]', space=smem, size = 0x4, offset = 0x4, fixed_abs, tag = 'smem constant byte address 0x4 - core index']
  #allocation1 [shape = 'u32[72,128]{1,0:T(1,128)}', space=vmem, size = 0x9000, scoped, tag = 'internal scratch']
  %s0 = inlined_call_operand.vmem [shape: f32[2,7,128], index: 0, kind: input, shape index: {}]
  %s1 = inlined_call_operand.vmem [shape: f32[2,7,128], index: 1, kind: input, shape index: {}]
  %s2 = inlined_call_operand.vmem [shape: f32[7,7], index: 2, kind: input, shape index: {}]
  %s3 = inlined_call_operand.vmem [shape: f32[7,1], index: 3, kind: input, shape index: {}]
  %s4 = inlined_call_operand.vmem [shape: f32[2,7,128], index: 4, kind: output, shape index: {}]
  %s5 = sld [smem:[#allocation0]]
  $region33: #{tpu_custom_call.1} parent=0
    _
  %s7 = ssub.s32 1, %s5
  %s8 = scalar_select 0, %s7, %s5
  // Predicated region
  $region2: #{tpu_custom_call.1} parent=0 // pred_check
    _
  $region3: #{tpu_custom_call.1} parent=0 // pred_check_branch
    %10 = sbr.rel (0) target = $region5
  $region4: #{tpu_custom_call.1} parent=0 // pred_region
    _
  $region5: #{tpu_custom_call.1} parent=0 // pred_fallthru
    _
  // Predicated region
  $region6: #{tpu_custom_call.1} parent=0 // pred_check
    _
  $region7: #{tpu_custom_call.1} parent=0 // pred_check_branch
    %12 = sbr.rel (0) target = $region9
  $region8: #{tpu_custom_call.1} parent=0 // pred_region
    _
  $region9: #{tpu_custom_call.1} parent=0 // pred_fallthru
    _
  // Predicated region
  $region10: #{tpu_custom_call.1} parent=0 // pred_check
    _
  $region11: #{tpu_custom_call.1} parent=0 // pred_check_branch
    %14 = sbr.rel (0) target = $region13
  $region12: #{tpu_custom_call.1} parent=0 // pred_region
    _
  $region13: #{tpu_custom_call.1} parent=0 // pred_fallthru
    _
  // Predicated region
  $region14: #{tpu_custom_call.1} parent=0 // pred_check
    _
  $region15: #{tpu_custom_call.1} parent=0 // pred_check_branch
    %16 = sbr.rel (0) target = $region17
  $region16: #{tpu_custom_call.1} parent=0 // pred_region
    _
  $region17: #{tpu_custom_call.1} parent=0 // pred_fallthru
    _
  %v17 = vld [vmem:[%s2] sm:$0x7f]
  %v18 = vld [vmem:[%s3] sm:$0x7f]
  loop: start=0, step=1, limit=2
  $region18: #{tpu_custom_call.1} parent=0 // loop_pre_header
    _
  $region19: #{tpu_custom_call.1} parent=0 // loop_header
    %s20 = sphi 0, %s24
    %p21 = scmp.ge.s32.totalorder %s20, 2
  $region20: #{tpu_custom_call.1} parent=0 // loop_header_branch
    %23 = sbr.rel (%p21) target = $region24
  $region21: #{tpu_custom_call.1} parent=0 // loop_body
    %s25 = smul.u32 %s20, 8
    %s26 = scalar_lea.vmem %s0, %s25
    %v27 = vld [vmem:[%s26] sm:$0x7f]
    %v28 = vmul.f32 %v27, 0.37796447
    %s29 = scalar_lea.vmem %s1, %s25
    %v30 = vld [vmem:[%s29] sm:$0x7f]
    %32 = vset.pattern.permute.xlu0 0
    %33 = vperm.xlu0 %32, %v18
    %v34 = vpop.permute.xlu0 %33
    %vm36 = vcmask 56320
    %v38 = vsel %vm36, %v17, 0
    %vm40 = vcmask 1046528
    %v42 = vsel %vm40, %v30, 0
    %44 = vmatpush.msra.mxu0 0.0
    %45 = vmatpush.msra.mxu0 0.0
    %46 = vmatpush.msra.mxu0 0.0
    %47 = vmatpush.msra.mxu0 0.0
    %48 = vmatpush.msra.mxu0 0.0
    %49 = vmatpush.msra.mxu0 0.0
    %50 = vmatpush.msra.mxu0 0.0
    %51 = vmatpush.msra.mxu0 0.0
    %52 = vmatpush.msra.mxu0 0.0
    %53 = vmatpush.msra.mxu0 0.0
    %54 = vmatpush.msra.mxu0 0.0
    %55 = vmatpush.msra.mxu0 0.0
    %56 = vmatpush.msra.mxu0 0.0
    %57 = vmatpush.msra.mxu0 0.0
    %58 = vmatpush.msra.mxu0 0.0
    %59 = vmatpush.msra.mxu0 %v42
    %60 = vmatmul.f32.gmra.mxu0 %v38
    %v61 = vpop.f32.mrf.mxu0
    %v62 = vadd.f32 %v34, %v61
    %63 = vdwg.mxu0
    %64 = vxpose.xlu0.b32.start [1/16] %v28, 128
    %65 = vxpose.xlu0.b32.cont [2/16] 0.0, 128
    %66 = vxpose.xlu0.b32.cont [3/16] 0.0, 128
    %67 = vxpose.xlu0.b32.cont [4/16] 0.0, 128
    %68 = vxpose.xlu0.b32.cont [5/16] 0.0, 128
    %69 = vxpose.xlu0.b32.cont [6/16] 0.0, 128
    %70 = vxpose.xlu0.b32.cont [7/16] 0.0, 128
    %71 = vxpose.xlu0.b32.cont [8/16] 0.0, 128
    %72 = vxpose.xlu0.b32.cont [9/16] 0.0, 128
    %73 = vxpose.xlu0.b32.cont [10/16] 0.0, 128
    %74 = vxpose.xlu0.b32.cont [11/16] 0.0, 128
    %75 = vxpose.xlu0.b32.cont [12/16] 0.0, 128
    %76 = vxpose.xlu0.b32.cont [13/16] 0.0, 128
    %77 = vxpose.xlu0.b32.cont [14/16] 0.0, 128
    %78 = vxpose.xlu0.b32.cont [15/16] 0.0, 128
    %79 = vxpose.xlu0.b32.end [16/16] 0.0, 128
    %v80 = vpop.trf.xlu0
    %v81 = vpop.trf.xlu0
    %v82 = vpop.trf.xlu0
    %v83 = vpop.trf.xlu0
    %v84 = vpop.trf.xlu0
    %v85 = vpop.trf.xlu0
    %v86 = vpop.trf.xlu0
    %v87 = vpop.trf.xlu0
    %v88 = vpop.trf.xlu0
    %v89 = vpop.trf.xlu0
    %v90 = vpop.trf.xlu0
    %v91 = vpop.trf.xlu0
    %v92 = vpop.trf.xlu0
    %v93 = vpop.trf.xlu0
    %v94 = vpop.trf.xlu0
    %v95 = vpop.trf.xlu0
    %v97 = vsel %vm36, %v80, 0
    %v100 = vsel %vm36, %v81, 0
    %v103 = vsel %vm36, %v82, 0
    %v106 = vsel %vm36, %v83, 0
    %v109 = vsel %vm36, %v84, 0
    %v112 = vsel %vm36, %v85, 0
    %v115 = vsel %vm36, %v86, 0
    %v118 = vsel %vm36, %v87, 0
    %v121 = vsel %vm36, %v88, 0
    %v124 = vsel %vm36, %v89, 0
    %v127 = vsel %vm36, %v90, 0
    %v130 = vsel %vm36, %v91, 0
    %v133 = vsel %vm36, %v92, 0
    %v136 = vsel %vm36, %v93, 0
    %v139 = vsel %vm36, %v94, 0
    %v142 = vsel %vm36, %v95, 0
    %144 = vmatpush.msra.mxu0 0.0
    %145 = vmatpush.msra.mxu0 0.0
    %146 = vmatpush.msra.mxu0 0.0
    %147 = vmatpush.msra.mxu0 0.0
    %148 = vmatpush.msra.mxu0 0.0
    %149 = vmatpush.msra.mxu0 0.0
    %150 = vmatpush.msra.mxu0 0.0
    %151 = vmatpush.msra.mxu0 0.0
    %152 = vmatpush.msra.mxu0 0.0
    %153 = vmatpush.msra.mxu0 0.0
    %154 = vmatpush.msra.mxu0 0.0
    %155 = vmatpush.msra.mxu0 0.0
    %156 = vmatpush.msra.mxu0 0.0
    %157 = vmatpush.msra.mxu0 0.0
    %158 = vmatpush.msra.mxu0 0.0
    %159 = vmatpush.msra.mxu0 %v42
    %160 = vmatmul.f32.gmra.mxu0 %v97
    %v161 = vpop.f32.mrf.mxu0
    %v162 = vadd.f32 0.0, %v161
    %163 = vmatmul.f32.gmra.mxu0 %v100
    %v164 = vpop.f32.mrf.mxu0
    %v165 = vadd.f32 0.0, %v164
    %166 = vmatmul.f32.gmra.mxu0 %v103
    %v167 = vpop.f32.mrf.mxu0
    %v168 = vadd.f32 0.0, %v167
    %169 = vmatmul.f32.gmra.mxu0 %v106
    %v170 = vpop.f32.mrf.mxu0
    %v171 = vadd.f32 0.0, %v170
    %172 = vmatmul.f32.gmra.mxu0 %v109
    %v173 = vpop.f32.mrf.mxu0
    %v174 = vadd.f32 0.0, %v173
    %175 = vmatmul.f32.gmra.mxu0 %v112
    %v176 = vpop.f32.mrf.mxu0
    %v177 = vadd.f32 0.0, %v176
    %178 = vmatmul.f32.gmra.mxu0 %v115
    %v179 = vpop.f32.mrf.mxu0
    %v180 = vadd.f32 0.0, %v179
    %181 = vmatmul.f32.gmra.mxu0 %v118
    %v182 = vpop.f32.mrf.mxu0
    %v183 = vadd.f32 0.0, %v182
    %184 = vmatmul.f32.gmra.mxu0 %v121
    %v185 = vpop.f32.mrf.mxu0
    %v186 = vadd.f32 0.0, %v185
    %187 = vmatmul.f32.gmra.mxu0 %v124
    %v188 = vpop.f32.mrf.mxu0
    %v189 = vadd.f32 0.0, %v188
    %190 = vmatmul.f32.gmra.mxu0 %v127
    %v191 = vpop.f32.mrf.mxu0
    %v192 = vadd.f32 0.0, %v191
    %193 = vmatmul.f32.gmra.mxu0 %v130
    %v194 = vpop.f32.mrf.mxu0
    %v195 = vadd.f32 0.0, %v194
    %196 = vmatmul.f32.gmra.mxu0 %v133
    %v197 = vpop.f32.mrf.mxu0
    %v198 = vadd.f32 0.0, %v197
    %199 = vmatmul.f32.gmra.mxu0 %v136
    %v200 = vpop.f32.mrf.mxu0
    %v201 = vadd.f32 0.0, %v200
    %202 = vmatmul.f32.gmra.mxu0 %v139
    %v203 = vpop.f32.mrf.mxu0
    %v204 = vadd.f32 0.0, %v203
    %205 = vmatmul.f32.gmra.mxu0 %v142
    %v206 = vpop.f32.mrf.mxu0
    %v207 = vadd.f32 0.0, %v206
    %208 = vdwg.mxu0
    %209 = vmax.xlane.f32.xlu0 %v162
    %v210 = vpop.xlane.xlu0 %209
    %211 = vmax.xlane.f32.xlu0 %v165
    %v212 = vpop.xlane.xlu0 %211
    %213 = vmax.xlane.f32.xlu0 %v168
    %v214 = vpop.xlane.xlu0 %213
    %215 = vmax.xlane.f32.xlu0 %v171
    %v216 = vpop.xlane.xlu0 %215
    %217 = vmax.xlane.f32.xlu0 %v174
    %v218 = vpop.xlane.xlu0 %217
    %219 = vmax.xlane.f32.xlu0 %v177
    %v220 = vpop.xlane.xlu0 %219
    %221 = vmax.xlane.f32.xlu0 %v180
    %v222 = vpop.xlane.xlu0 %221
    %223 = vmax.xlane.f32.xlu0 %v183
    %v224 = vpop.xlane.xlu0 %223
    %225 = vmax.xlane.f32.xlu0 %v186
    %v226 = vpop.xlane.xlu0 %225
    %227 = vmax.xlane.f32.xlu0 %v189
    %v228 = vpop.xlane.xlu0 %227
    %229 = vmax.xlane.f32.xlu0 %v192
    %v230 = vpop.xlane.xlu0 %229
    %231 = vmax.xlane.f32.xlu0 %v195
    %v232 = vpop.xlane.xlu0 %231
    %233 = vmax.xlane.f32.xlu0 %v198
    %v234 = vpop.xlane.xlu0 %233
    %235 = vmax.xlane.f32.xlu0 %v201
    %v236 = vpop.xlane.xlu0 %235
    %237 = vmax.xlane.f32.xlu0 %v204
    %v238 = vpop.xlane.xlu0 %237
    %239 = vmax.xlane.f32.xlu0 %v207
    %v240 = vpop.xlane.xlu0 %239
    %v241 = vsub.f32 %v162, %v210
    %v242 = vsub.f32 %v165, %v212
    %v243 = vsub.f32 %v168, %v214
    %v244 = vsub.f32 %v171, %v216
    %v245 = vsub.f32 %v174, %v218
    %v246 = vsub.f32 %v177, %v220
    %v247 = vsub.f32 %v180, %v222
    %v248 = vsub.f32 %v183, %v224
    %v249 = vsub.f32 %v186, %v226
    %v250 = vsub.f32 %v189, %v228
    %v251 = vsub.f32 %v192, %v230
    %v252 = vsub.f32 %v195, %v232
    %v253 = vsub.f32 %v198, %v234
    %v254 = vsub.f32 %v201, %v236
    %v255 = vsub.f32 %v204, %v238
    %v256 = vsub.f32 %v207, %v240
    %v257 = vmul.f32 %v241, 1.442695
    %v258 = vpow.pop %v257
    %v259 = vmul.f32 %v242, 1.442695
    %v260 = vpow.pop %v259
    %v261 = vmul.f32 %v243, 1.442695
    %v262 = vpow.pop %v261
    %v263 = vmul.f32 %v244, 1.442695
    %v264 = vpow.pop %v263
    %v265 = vmul.f32 %v245, 1.442695
    %v266 = vpow.pop %v265
    %v267 = vmul.f32 %v246, 1.442695
    %v268 = vpow.pop %v267
    %v269 = vmul.f32 %v247, 1.442695
    %v270 = vpow.pop %v269
    %v271 = vmul.f32 %v248, 1.442695
    %v272 = vpow.pop %v271
    %v273 = vmul.f32 %v249, 1.442695
    %v274 = vpow.pop %v273
    %v275 = vmul.f32 %v250, 1.442695
    %v276 = vpow.pop %v275
    %v277 = vmul.f32 %v251, 1.442695
    %v278 = vpow.pop %v277
    %v279 = vmul.f32 %v252, 1.442695
    %v280 = vpow.pop %v279
    %v281 = vmul.f32 %v253, 1.442695
    %v282 = vpow.pop %v281
    %v283 = vmul.f32 %v254, 1.442695
    %v284 = vpow.pop %v283
    %v285 = vmul.f32 %v255, 1.442695
    %v286 = vpow.pop %v285
    %v287 = vmul.f32 %v256, 1.442695
    %v288 = vpow.pop %v287
    %289 = vadd.xlane.f32.xlu0 %v258
    %v290 = vpop.xlane.xlu0 %289
    %291 = vadd.xlane.f32.xlu0 %v260
    %v292 = vpop.xlane.xlu0 %291
    %293 = vadd.xlane.f32.xlu0 %v262
    %v294 = vpop.xlane.xlu0 %293
    %295 = vadd.xlane.f32.xlu0 %v264
    %v296 = vpop.xlane.xlu0 %295
    %297 = vadd.xlane.f32.xlu0 %v266
    %v298 = vpop.xlane.xlu0 %297
    %299 = vadd.xlane.f32.xlu0 %v268
    %v300 = vpop.xlane.xlu0 %299
    %301 = vadd.xlane.f32.xlu0 %v270
    %v302 = vpop.xlane.xlu0 %301
    %303 = vadd.xlane.f32.xlu0 %v272
    %v304 = vpop.xlane.xlu0 %303
    %305 = vadd.xlane.f32.xlu0 %v274
    %v306 = vpop.xlane.xlu0 %305
    %307 = vadd.xlane.f32.xlu0 %v276
    %v308 = vpop.xlane.xlu0 %307
    %309 = vadd.xlane.f32.xlu0 %v278
    %v310 = vpop.xlane.xlu0 %309
    %311 = vadd.xlane.f32.xlu0 %v280
    %v312 = vpop.xlane.xlu0 %311
    %313 = vadd.xlane.f32.xlu0 %v282
    %v314 = vpop.xlane.xlu0 %313
    %315 = vadd.xlane.f32.xlu0 %v284
    %v316 = vpop.xlane.xlu0 %315
    %317 = vadd.xlane.f32.xlu0 %v286
    %v318 = vpop.xlane.xlu0 %317
    %319 = vadd.xlane.f32.xlu0 %v288
    %v320 = vpop.xlane.xlu0 %319
    %v321 = vrcp.pop %v290
    %v322 = vmul.f32 %v290, %v321
    %v323 = vsub.f32 1.0, %v322
    %v324 = vmul.f32 %v321, %v323
    %v325 = vadd.f32 %v321, %v324
    %vm326 = vweird.f32 %v290
    %vm327 = vweird.f32 %v321
    %vm328 = vmor %vm326, %vm327
    %v329 = vsel %vm328, %v321, %v325
    %v330 = vand.u32 2147483647, %v290
    %vm331 = vcmp.eq.f32.partialorder %v330, 8.507059e+37
    %v332 = vand.u32 %v290, 2147483648
    %v333 = vor.u32 1.1754944e-38, %v332
    %v334 = vsel %vm331, %v333, %v329
    %v335 = vmul.f32 %v258, %v334
    %v336 = vrcp.pop %v292
    %v337 = vmul.f32 %v292, %v336
    %v338 = vsub.f32 1.0, %v337
    %v339 = vmul.f32 %v336, %v338
    %v340 = vadd.f32 %v336, %v339
    %vm341 = vweird.f32 %v292
    %vm342 = vweird.f32 %v336
    %vm343 = vmor %vm341, %vm342
    %v344 = vsel %vm343, %v336, %v340
    %v345 = vand.u32 2147483647, %v292
    %vm346 = vcmp.eq.f32.partialorder %v345, 8.507059e+37
    %v347 = vand.u32 %v292, 2147483648
    %v348 = vor.u32 1.1754944e-38, %v347
    %v349 = vsel %vm346, %v348, %v344
    %v350 = vmul.f32 %v260, %v349
    %v351 = vrcp.pop %v294
    %v352 = vmul.f32 %v294, %v351
    %v353 = vsub.f32 1.0, %v352
    %v354 = vmul.f32 %v351, %v353
    %v355 = vadd.f32 %v351, %v354
    %vm356 = vweird.f32 %v294
    %vm357 = vweird.f32 %v351
    %vm358 = vmor %vm356, %vm357
    %v359 = vsel %vm358, %v351, %v355
    %v360 = vand.u32 2147483647, %v294
    %vm361 = vcmp.eq.f32.partialorder %v360, 8.507059e+37
    %v362 = vand.u32 %v294, 2147483648
    %v363 = vor.u32 1.1754944e-38, %v362
    %v364 = vsel %vm361, %v363, %v359
    %v365 = vmul.f32 %v262, %v364
    %v366 = vrcp.pop %v296
    %v367 = vmul.f32 %v296, %v366
    %v368 = vsub.f32 1.0, %v367
    %v369 = vmul.f32 %v366, %v368
    %v370 = vadd.f32 %v366, %v369
    %vm371 = vweird.f32 %v296
    %vm372 = vweird.f32 %v366
    %vm373 = vmor %vm371, %vm372
    %v374 = vsel %vm373, %v366, %v370
    %v375 = vand.u32 2147483647, %v296
    %vm376 = vcmp.eq.f32.partialorder %v375, 8.507059e+37
    %v377 = vand.u32 %v296, 2147483648
    %v378 = vor.u32 1.1754944e-38, %v377
    %v379 = vsel %vm376, %v378, %v374
    %v380 = vmul.f32 %v264, %v379
    %v381 = vrcp.pop %v298
    %v382 = vmul.f32 %v298, %v381
    %v383 = vsub.f32 1.0, %v382
    %v384 = vmul.f32 %v381, %v383
    %v385 = vadd.f32 %v381, %v384
    %vm386 = vweird.f32 %v298
    %vm387 = vweird.f32 %v381
    %vm388 = vmor %vm386, %vm387
    %v389 = vsel %vm388, %v381, %v385
    %v390 = vand.u32 2147483647, %v298
    %vm391 = vcmp.eq.f32.partialorder %v390, 8.507059e+37
    %v392 = vand.u32 %v298, 2147483648
    %v393 = vor.u32 1.1754944e-38, %v392
    %v394 = vsel %vm391, %v393, %v389
    %v395 = vmul.f32 %v266, %v394
    %v396 = vrcp.pop %v300
    %v397 = vmul.f32 %v300, %v396
    %v398 = vsub.f32 1.0, %v397
    %v399 = vmul.f32 %v396, %v398
    %v400 = vadd.f32 %v396, %v399
    %vm401 = vweird.f32 %v300
    %vm402 = vweird.f32 %v396
    %vm403 = vmor %vm401, %vm402
    %v404 = vsel %vm403, %v396, %v400
    %v405 = vand.u32 2147483647, %v300
    %vm406 = vcmp.eq.f32.partialorder %v405, 8.507059e+37
    %v407 = vand.u32 %v300, 2147483648
    %v408 = vor.u32 1.1754944e-38, %v407
    %v409 = vsel %vm406, %v408, %v404
    %v410 = vmul.f32 %v268, %v409
    %v411 = vrcp.pop %v302
    %v412 = vmul.f32 %v302, %v411
    %v413 = vsub.f32 1.0, %v412
    %v414 = vmul.f32 %v411, %v413
    %v415 = vadd.f32 %v411, %v414
    %vm416 = vweird.f32 %v302
    %vm417 = vweird.f32 %v411
    %vm418 = vmor %vm416, %vm417
    %v419 = vsel %vm418, %v411, %v415
    %v420 = vand.u32 2147483647, %v302
    %vm421 = vcmp.eq.f32.partialorder %v420, 8.507059e+37
    %v422 = vand.u32 %v302, 2147483648
    %v423 = vor.u32 1.1754944e-38, %v422
    %v424 = vsel %vm421, %v423, %v419
    %v425 = vmul.f32 %v270, %v424
    %v426 = vrcp.pop %v304
    %v427 = vmul.f32 %v304, %v426
    %v428 = vsub.f32 1.0, %v427
    %v429 = vmul.f32 %v426, %v428
    %v430 = vadd.f32 %v426, %v429
    %vm431 = vweird.f32 %v304
    %vm432 = vweird.f32 %v426
    %vm433 = vmor %vm431, %vm432
    %v434 = vsel %vm433, %v426, %v430
    %v435 = vand.u32 2147483647, %v304
    %vm436 = vcmp.eq.f32.partialorder %v435, 8.507059e+37
    %v437 = vand.u32 %v304, 2147483648
    %v438 = vor.u32 1.1754944e-38, %v437
    %v439 = vsel %vm436, %v438, %v434
    %v440 = vmul.f32 %v272, %v439
    %v441 = vrcp.pop %v306
    %v442 = vmul.f32 %v306, %v441
    %v443 = vsub.f32 1.0, %v442
    %v444 = vmul.f32 %v441, %v443
    %v445 = vadd.f32 %v441, %v444
    %vm446 = vweird.f32 %v306
    %vm447 = vweird.f32 %v441
    %vm448 = vmor %vm446, %vm447
    %v449 = vsel %vm448, %v441, %v445
    %v450 = vand.u32 2147483647, %v306
    %vm451 = vcmp.eq.f32.partialorder %v450, 8.507059e+37
    %v452 = vand.u32 %v306, 2147483648
    %v453 = vor.u32 1.1754944e-38, %v452
    %v454 = vsel %vm451, %v453, %v449
    %v455 = vmul.f32 %v274, %v454
    %v456 = vrcp.pop %v308
    %v457 = vmul.f32 %v308, %v456
    %v458 = vsub.f32 1.0, %v457
    %v459 = vmul.f32 %v456, %v458
    %v460 = vadd.f32 %v456, %v459
    %vm461 = vweird.f32 %v308
    %vm462 = vweird.f32 %v456
    %vm463 = vmor %vm461, %vm462
    %v464 = vsel %vm463, %v456, %v460
    %v465 = vand.u32 2147483647, %v308
    %vm466 = vcmp.eq.f32.partialorder %v465, 8.507059e+37
    %v467 = vand.u32 %v308, 2147483648
    %v468 = vor.u32 1.1754944e-38, %v467
    %v469 = vsel %vm466, %v468, %v464
    %v470 = vmul.f32 %v276, %v469
    %v471 = vrcp.pop %v310
    %v472 = vmul.f32 %v310, %v471
    %v473 = vsub.f32 1.0, %v472
    %v474 = vmul.f32 %v471, %v473
    %v475 = vadd.f32 %v471, %v474
    %vm476 = vweird.f32 %v310
    %vm477 = vweird.f32 %v471
    %vm478 = vmor %vm476, %vm477
    %v479 = vsel %vm478, %v471, %v475
    %v480 = vand.u32 2147483647, %v310
    %vm481 = vcmp.eq.f32.partialorder %v480, 8.507059e+37
    %v482 = vand.u32 %v310, 2147483648
    %v483 = vor.u32 1.1754944e-38, %v482
    %v484 = vsel %vm481, %v483, %v479
    %v485 = vmul.f32 %v278, %v484
    %v486 = vrcp.pop %v312
    %v487 = vmul.f32 %v312, %v486
    %v488 = vsub.f32 1.0, %v487
    %v489 = vmul.f32 %v486, %v488
    %v490 = vadd.f32 %v486, %v489
    %vm491 = vweird.f32 %v312
    %vm492 = vweird.f32 %v486
    %vm493 = vmor %vm491, %vm492
    %v494 = vsel %vm493, %v486, %v490
    %v495 = vand.u32 2147483647, %v312
    %vm496 = vcmp.eq.f32.partialorder %v495, 8.507059e+37
    %v497 = vand.u32 %v312, 2147483648
    %v498 = vor.u32 1.1754944e-38, %v497
    %v499 = vsel %vm496, %v498, %v494
    %v500 = vmul.f32 %v280, %v499
    %v501 = vrcp.pop %v314
    %v502 = vmul.f32 %v314, %v501
    %v503 = vsub.f32 1.0, %v502
    %v504 = vmul.f32 %v501, %v503
    %v505 = vadd.f32 %v501, %v504
    %vm506 = vweird.f32 %v314
    %vm507 = vweird.f32 %v501
    %vm508 = vmor %vm506, %vm507
    %v509 = vsel %vm508, %v501, %v505
    %v510 = vand.u32 2147483647, %v314
    %vm511 = vcmp.eq.f32.partialorder %v510, 8.507059e+37
    %v512 = vand.u32 %v314, 2147483648
    %v513 = vor.u32 1.1754944e-38, %v512
    %v514 = vsel %vm511, %v513, %v509
    %v515 = vmul.f32 %v282, %v514
    %v516 = vrcp.pop %v316
    %v517 = vmul.f32 %v316, %v516
    %v518 = vsub.f32 1.0, %v517
    %v519 = vmul.f32 %v516, %v518
    %v520 = vadd.f32 %v516, %v519
    %vm521 = vweird.f32 %v316
    %vm522 = vweird.f32 %v516
    %vm523 = vmor %vm521, %vm522
    %v524 = vsel %vm523, %v516, %v520
    %v525 = vand.u32 2147483647, %v316
    %vm526 = vcmp.eq.f32.partialorder %v525, 8.507059e+37
    %v527 = vand.u32 %v316, 2147483648
    %v528 = vor.u32 1.1754944e-38, %v527
    %v529 = vsel %vm526, %v528, %v524
    %v530 = vmul.f32 %v284, %v529
    %v531 = vrcp.pop %v318
    %v532 = vmul.f32 %v318, %v531
    %v533 = vsub.f32 1.0, %v532
    %v534 = vmul.f32 %v531, %v533
    %v535 = vadd.f32 %v531, %v534
    %vm536 = vweird.f32 %v318
    %vm537 = vweird.f32 %v531
    %vm538 = vmor %vm536, %vm537
    %v539 = vsel %vm538, %v531, %v535
    %v540 = vand.u32 2147483647, %v318
    %vm541 = vcmp.eq.f32.partialorder %v540, 8.507059e+37
    %v542 = vand.u32 %v318, 2147483648
    %v543 = vor.u32 1.1754944e-38, %v542
    %v544 = vsel %vm541, %v543, %v539
    %v545 = vmul.f32 %v286, %v544
    %v546 = vrcp.pop %v320
    %v547 = vmul.f32 %v320, %v546
    %v548 = vsub.f32 1.0, %v547
    %v549 = vmul.f32 %v546, %v548
    %v550 = vadd.f32 %v546, %v549
    %vm551 = vweird.f32 %v320
    %vm552 = vweird.f32 %v546
    %vm553 = vmor %vm551, %vm552
    %v554 = vsel %vm553, %v546, %v550
    %v555 = vand.u32 2147483647, %v320
    %vm556 = vcmp.eq.f32.partialorder %v555, 8.507059e+37
    %v557 = vand.u32 %v320, 2147483648
    %v558 = vor.u32 1.1754944e-38, %v557
    %v559 = vsel %vm556, %v558, %v554
    %v560 = vmul.f32 %v288, %v559
    %561 = vmatpush.msra.mxu0 %v560
    %562 = vmatpush.msra.mxu0 %v545
    %563 = vmatpush.msra.mxu0 %v530
    %564 = vmatpush.msra.mxu0 %v515
    %565 = vmatpush.msra.mxu0 %v500
    %566 = vmatpush.msra.mxu0 %v485
    %567 = vmatpush.msra.mxu0 %v470
    %568 = vmatpush.msra.mxu0 %v455
    %569 = vmatpush.msra.mxu0 %v440
    %570 = vmatpush.msra.mxu0 %v425
    %571 = vmatpush.msra.mxu0 %v410
    %572 = vmatpush.msra.mxu0 %v395
    %573 = vmatpush.msra.mxu0 %v380
    %574 = vmatpush.msra.mxu0 %v365
    %575 = vmatpush.msra.mxu0 %v350
    %576 = vmatpush.msra.mxu0 %v335
    %577 = vmatmul.f32.gmra.mxu0 %v62
    %v578 = vpop.f32.mrf.mxu0
    %v579 = vadd.f32 0.0, %v578
    %580 = vdwg.mxu0
    %s581 = scalar_lea.vmem %s4, %s25
    %582 = vst [vmem:[%s581] sm:$0x7f] %v579
  $region22: #{tpu_custom_call.1} parent=0 // loop_footer
    %s24 = sadd.s32 1, %s20
  $region23: #{tpu_custom_call.1} parent=0 // loop_footer_branch
    %19 = sbr.rel target = $region19
  $region24: #{tpu_custom_call.1} parent=0 // loop_exit
    _
  // Predicated region
  $region25: #{tpu_custom_call.1} parent=0 // pred_check
    _
  $region26: #{tpu_custom_call.1} parent=0 // pred_check_branch
    %584 = sbr.rel (0) target = $region28
  $region27: #{tpu_custom_call.1} parent=0 // pred_region
    _
  $region28: #{tpu_custom_call.1} parent=0 // pred_fallthru
    _
  // Predicated region
  $region29: #{tpu_custom_call.1} parent=0 // pred_check
    _
  $region30: #{tpu_custom_call.1} parent=0 // pred_check_branch
    %586 = sbr.rel (0) target = $region32
  $region31: #{tpu_custom_call.1} parent=0 // pred_region
    _
  $region32: #{tpu_custom_call.1} parent=0 // pred_fallthru
    _

</llo_original>
